<compile_context>
chip_gen: v5e
topology: v5e:2x2
jax: 0.10.0
libtpu: 0.0.40
codegen_flags: <defaults>
</compile_context>

<pallas_src>
import jax
import jax.numpy as jnp
from jax.experimental import pallas as pl
from jax.experimental.pallas import tpu as pltpu


def _round_up(x, m):
    return ((x + m - 1) // m) * m


def _make_mlp_kernel(n_layers):
    """Build a fused MLP kernel for a fixed (static) number of layers."""

    def kernel(*refs):
        # refs = (x_ref, w1, b1, w2, b2, ..., wn, bn, o_ref)
        x_ref = refs[0]
        o_ref = refs[-1]
        h = x_ref[...].astype(jnp.float32)
        for l in range(n_layers):
            w_ref = refs[1 + 2 * l]
            b_ref = refs[2 + 2 * l]
            # MXU matmul with f32 accumulation; bias-add + ReLU on the VPU.
            h = jnp.dot(h, w_ref[...], preferred_element_type=jnp.float32)
            h = jnp.maximum(h + b_ref[...].astype(jnp.float32), 0.0)
        o_ref[...] = h.astype(o_ref.dtype)

    return kernel


def _fused_mlp(x_p, padded_params, *, tb):
    """Run the fused MLP pallas_call on already-padded operands.

    x_p:            (Bp, D0p)  with Bp % tb == 0, D0p % 128 == 0
    padded_params:  list of (w (Dlp, Dl1p), b (1, Dl1p)) all 128-padded
    """
    n_layers = len(padded_params)
    Bp, D0p = x_p.shape
    dims_p = [D0p] + [w.shape[1] for w, _ in padded_params]

    in_specs = [pl.BlockSpec((tb, D0p), lambda i: (i, 0))]
    operands = [x_p]
    for l, (w, b) in enumerate(padded_params):
        kp, np_ = dims_p[l], dims_p[l + 1]
        # Grid-invariant index_map: weights/bias are fetched once and stay
        # resident in VMEM for every batch tile.
        in_specs.append(pl.BlockSpec((kp, np_), lambda i: (0, 0)))
        in_specs.append(pl.BlockSpec((1, np_), lambda i: (0, 0)))
        operands.append(w)
        operands.append(b)

    out_spec = pl.BlockSpec((tb, dims_p[-1]), lambda i: (i, 0))

    return pl.pallas_call(
        _make_mlp_kernel(n_layers),
        out_shape=jax.ShapeDtypeStruct((Bp, dims_p[-1]), x_p.dtype),
        grid=(Bp // tb,),
        in_specs=in_specs,
        out_specs=out_spec,
        compiler_params=pltpu.CompilerParams(
            # Batch tiles are independent -> parallel (megacore sharding on v7x).
            dimension_semantics=("parallel",),
        ),
    )(*operands)


@jax.jit
def dnn_forward(x, params):
    """Matches the PyTorch DNN: each Linear followed by a ReLU (incl. last)."""
    B, d_in = x.shape
    dims = [d_in] + [w.shape[1] for w, _ in params]

    # Pad features to multiples of 128 lanes, batch to a multiple of 8
    # sublanes; tile the batch axis at up to 512 rows per grid step.
    dims_p = [_round_up(d, 128) for d in dims]
    Bp = _round_up(B, 8)
    tb = Bp if Bp <= 512 else 512
    Bp = _round_up(Bp, tb)

    x_p = jnp.pad(x, ((0, Bp - B), (0, dims_p[0] - dims[0])))

    padded_params = []
    for l, (w, b) in enumerate(params):
        kp, np_ = dims_p[l], dims_p[l + 1]
        w_p = jnp.pad(w, ((0, kp - w.shape[0]), (0, np_ - w.shape[1])))
        b_p = jnp.pad(b.reshape(1, -1), ((0, 0), (0, np_ - b.shape[0])))
        padded_params.append((w_p, b_p))

    out_p = _fused_mlp(x_p, padded_params, tb=tb)
    return out_p[:B, : dims[-1]]


def init_dnn_params(key, layer_sizes):
    """Deterministic init mirroring torch.nn.Linear default (uniform ±1/sqrt(fan_in)).

    Weights are stored as (in_features, out_features), i.e. PyTorch W.T.
    """
    params = []
    for i in range(len(layer_sizes) - 1):
        fan_in, fan_out = layer_sizes[i], layer_sizes[i + 1]
        key, kw, kb = jax.random.split(key, 3)
        bound = 1.0 / jnp.sqrt(jnp.float32(fan_in))
        w = jax.random.uniform(
            kw, (fan_in, fan_out), dtype=jnp.float32, minval=-bound, maxval=bound
        )
        b = jax.random.uniform(
            kb, (fan_out,), dtype=jnp.float32, minval=-bound, maxval=bound
        )
        params.append((w, b))
    return params


def dnn_forward_ref(x, params):
    for w, b in params:
        x = jnp.maximum(x @ w + b, 0.0)
    return x


if __name__ == "__main__":
    key = jax.random.PRNGKey(0)
    layer_sizes = [32, 64, 48, 16]  # input dim 32, output dim 16
    batch = 4

    kx, kp = jax.random.split(key)
    x = jax.random.normal(kx, (batch, layer_sizes[0]), dtype=jnp.float32)
    params = init_dnn_params(kp, layer_sizes)

    out = dnn_forward(x, params)
    out = jax.block_until_ready(out)

    ref = dnn_forward_ref(x, params)
    assert out.shape == (batch, layer_sizes[-1])
    assert jnp.allclose(out, ref, atol=1e-5, rtol=1e-5)

    print("KERNEL_OK")
</pallas_src>

<mosaic_0001>
module attributes {stable_mosaic.version = 11 : i64} {
  func.func @kernel(%arg0: i32, %arg1: memref<8x128xf32, #tpu.memory_space<vmem>>, %arg2: memref<128x128xf32, #tpu.memory_space<vmem>>, %arg3: memref<1x128xf32, #tpu.memory_space<vmem>>, %arg4: memref<128x128xf32, #tpu.memory_space<vmem>>, %arg5: memref<1x128xf32, #tpu.memory_space<vmem>>, %arg6: memref<128x128xf32, #tpu.memory_space<vmem>>, %arg7: memref<1x128xf32, #tpu.memory_space<vmem>>, %arg8: memref<8x128xf32, #tpu.memory_space<vmem>>) attributes {dimension_semantics = [#tpu.dimension_semantics<parallel>], iteration_bounds = array<i64: 1>, scalar_prefetch = 0 : i64, scratch_operands = 0 : i64, tpu.core_type = #tpu.core_type<tc>, window_params = [{transform_indices = @transform_0, window_bounds = array<i64: 8, 128>}, {pipeline_mode = #tpu.pipeline_mode<synchronous>, transform_indices = @transform_1, window_bounds = array<i64: 128, 128>}, {pipeline_mode = #tpu.pipeline_mode<synchronous>, transform_indices = @transform_2, window_bounds = array<i64: 1, 128>}, {pipeline_mode = #tpu.pipeline_mode<synchronous>, transform_indices = @transform_3, window_bounds = array<i64: 128, 128>}, {pipeline_mode = #tpu.pipeline_mode<synchronous>, transform_indices = @transform_4, window_bounds = array<i64: 1, 128>}, {pipeline_mode = #tpu.pipeline_mode<synchronous>, transform_indices = @transform_5, window_bounds = array<i64: 128, 128>}, {pipeline_mode = #tpu.pipeline_mode<synchronous>, transform_indices = @transform_6, window_bounds = array<i64: 1, 128>}, {transform_indices = @transform_7, window_bounds = array<i64: 8, 128>}]} {
    %c0 = arith.constant 0 : index
    %c0_0 = arith.constant 0 : index
    %0 = vector.load %arg1[%c0, %c0_0] : memref<8x128xf32, #tpu.memory_space<vmem>>, vector<8x128xf32>
    %c0_1 = arith.constant 0 : index
    %c0_2 = arith.constant 0 : index
    %1 = vector.load %arg2[%c0_1, %c0_2] : memref<128x128xf32, #tpu.memory_space<vmem>>, vector<128x128xf32>
    %cst = arith.constant dense<0.000000e+00> : vector<8x128xf32>
    %2 = tpu.matmul %0, %1, %cst {dimension_numbers = #tpu.dot_dimension_numbers<[1], [0], [0], [1], [0, 0, 1, 1], [], []>} : vector<8x128xf32>, vector<128x128xf32>, vector<8x128xf32> -> vector<8x128xf32>
    %c0_3 = arith.constant 0 : index
    %c0_4 = arith.constant 0 : index
    %3 = vector.load %arg3[%c0_3, %c0_4] : memref<1x128xf32, #tpu.memory_space<vmem>>, vector<1x128xf32>
    %4 = vector.broadcast %3 : vector<1x128xf32> to vector<8x128xf32>
    %5 = arith.addf %2, %4 : vector<8x128xf32>
    %cst_5 = arith.constant 0.000000e+00 : f32
    %6 = vector.broadcast %cst_5 : f32 to vector<8x128xf32>
    %7 = arith.maximumf %5, %6 : vector<8x128xf32>
    %c0_6 = arith.constant 0 : index
    %c0_7 = arith.constant 0 : index
    %8 = vector.load %arg4[%c0_6, %c0_7] : memref<128x128xf32, #tpu.memory_space<vmem>>, vector<128x128xf32>
    %cst_8 = arith.constant dense<0.000000e+00> : vector<8x128xf32>
    %9 = tpu.matmul %7, %8, %cst_8 {dimension_numbers = #tpu.dot_dimension_numbers<[1], [0], [0], [1], [0, 0, 1, 1], [], []>} : vector<8x128xf32>, vector<128x128xf32>, vector<8x128xf32> -> vector<8x128xf32>
    %c0_9 = arith.constant 0 : index
    %c0_10 = arith.constant 0 : index
    %10 = vector.load %arg5[%c0_9, %c0_10] : memref<1x128xf32, #tpu.memory_space<vmem>>, vector<1x128xf32>
    %11 = vector.broadcast %10 : vector<1x128xf32> to vector<8x128xf32>
    %12 = arith.addf %9, %11 : vector<8x128xf32>
    %cst_11 = arith.constant 0.000000e+00 : f32
    %13 = vector.broadcast %cst_11 : f32 to vector<8x128xf32>
    %14 = arith.maximumf %12, %13 : vector<8x128xf32>
    %c0_12 = arith.constant 0 : index
    %c0_13 = arith.constant 0 : index
    %15 = vector.load %arg6[%c0_12, %c0_13] : memref<128x128xf32, #tpu.memory_space<vmem>>, vector<128x128xf32>
    %cst_14 = arith.constant dense<0.000000e+00> : vector<8x128xf32>
    %16 = tpu.matmul %14, %15, %cst_14 {dimension_numbers = #tpu.dot_dimension_numbers<[1], [0], [0], [1], [0, 0, 1, 1], [], []>} : vector<8x128xf32>, vector<128x128xf32>, vector<8x128xf32> -> vector<8x128xf32>
    %c0_15 = arith.constant 0 : index
    %c0_16 = arith.constant 0 : index
    %17 = vector.load %arg7[%c0_15, %c0_16] : memref<1x128xf32, #tpu.memory_space<vmem>>, vector<1x128xf32>
    %18 = vector.broadcast %17 : vector<1x128xf32> to vector<8x128xf32>
    %19 = arith.addf %16, %18 : vector<8x128xf32>
    %cst_17 = arith.constant 0.000000e+00 : f32
    %20 = vector.broadcast %cst_17 : f32 to vector<8x128xf32>
    %21 = arith.maximumf %19, %20 : vector<8x128xf32>
    %c0_18 = arith.constant 0 : index
    %c0_19 = arith.constant 0 : index
    %22 = vector.load %arg8[%c0_18, %c0_19] : memref<8x128xf32, #tpu.memory_space<vmem>>, vector<8x128xf32>
    tpu.vector_store %arg8[%c0_18, %c0_19], %21 {strides = array<i32>} : memref<8x128xf32, #tpu.memory_space<vmem>>, vector<8x128xf32>,
    return
  }
  func.func @transform_0(%arg0: i32) -> (i32, i32) {
    %c0_i32 = arith.constant 0 : i32
    %c0_i32_0 = arith.constant 0 : i32
    return %arg0, %c0_i32 : i32, i32
  }
  func.func @transform_1(%arg0: i32) -> (i32, i32) {
    %c0_i32 = arith.constant 0 : i32
    %c0_i32_0 = arith.constant 0 : i32
    %c0_i32_1 = arith.constant 0 : i32
    return %c0_i32, %c0_i32_0 : i32, i32
  }
  func.func @transform_2(%arg0: i32) -> (i32, i32) {
    %c0_i32 = arith.constant 0 : i32
    %c0_i32_0 = arith.constant 0 : i32
    %c0_i32_1 = arith.constant 0 : i32
    return %c0_i32, %c0_i32_0 : i32, i32
  }
  func.func @transform_3(%arg0: i32) -> (i32, i32) {
    %c0_i32 = arith.constant 0 : i32
    %c0_i32_0 = arith.constant 0 : i32
    %c0_i32_1 = arith.constant 0 : i32
    return %c0_i32, %c0_i32_0 : i32, i32
  }
  func.func @transform_4(%arg0: i32) -> (i32, i32) {
    %c0_i32 = arith.constant 0 : i32
    %c0_i32_0 = arith.constant 0 : i32
    %c0_i32_1 = arith.constant 0 : i32
    return %c0_i32, %c0_i32_0 : i32, i32
  }
  func.func @transform_5(%arg0: i32) -> (i32, i32) {
    %c0_i32 = arith.constant 0 : i32
    %c0_i32_0 = arith.constant 0 : i32
    %c0_i32_1 = arith.constant 0 : i32
    return %c0_i32, %c0_i32_0 : i32, i32
  }
  func.func @transform_6(%arg0: i32) -> (i32, i32) {
    %c0_i32 = arith.constant 0 : i32
    %c0_i32_0 = arith.constant 0 : i32
    %c0_i32_1 = arith.constant 0 : i32
    return %c0_i32, %c0_i32_0 : i32, i32
  }
  func.func @transform_7(%arg0: i32) -> (i32, i32) {
    %c0_i32 = arith.constant 0 : i32
    %c0_i32_0 = arith.constant 0 : i32
    return %arg0, %c0_i32 : i32, i32
  }
}

</mosaic_0001>

<llo_original>
// kernel: dnn_forward.1
$region0: #{dnn_forward.1}
  #allocation0 [shape = 'u32[]', space=smem, size = 0x4, offset = 0x4, fixed_abs, tag = 'smem constant byte address 0x4 - core index']
  #allocation1 [shape = 'u32[72,128]{1,0:T(1,128)}', space=vmem, size = 0x9000, scoped, tag = 'internal scratch']
  %s0 = inlined_call_operand.vmem [shape: f32[8,128], index: 0, kind: input, shape index: {}]
  %s1 = inlined_call_operand.vmem [shape: f32[128,128], index: 1, kind: input, shape index: {}]
  %s2 = inlined_call_operand.vmem [shape: f32[1,128], index: 2, kind: input, shape index: {}]
  %s3 = inlined_call_operand.vmem [shape: f32[128,128], index: 3, kind: input, shape index: {}]
  %s4 = inlined_call_operand.vmem [shape: f32[1,128], index: 4, kind: input, shape index: {}]
  %s5 = inlined_call_operand.vmem [shape: f32[128,128], index: 5, kind: input, shape index: {}]
  %s6 = inlined_call_operand.vmem [shape: f32[1,128], index: 6, kind: input, shape index: {}]
  %s7 = inlined_call_operand.vmem [shape: f32[8,128], index: 7, kind: output, shape index: {}]
  %s8 = sld [smem:[#allocation0]]
  $region38: #{dnn_forward.1} parent=0
    _
  %s10 = ssub.s32 1, %s8
  %s11 = scalar_select 0, %s10, %s8
  // Predicated region
  $region2: #{dnn_forward.1} parent=0 // pred_check
    _
  $region3: #{dnn_forward.1} parent=0 // pred_check_branch
    %13 = sbr.rel (0) target = $region5
  $region4: #{dnn_forward.1} parent=0 // pred_region
    _
  $region5: #{dnn_forward.1} parent=0 // pred_fallthru
    _
  // Predicated region
  $region6: #{dnn_forward.1} parent=0 // pred_check
    _
  $region7: #{dnn_forward.1} parent=0 // pred_check_branch
    %15 = sbr.rel (0) target = $region9
  $region8: #{dnn_forward.1} parent=0 // pred_region
    _
  $region9: #{dnn_forward.1} parent=0 // pred_fallthru
    _
  // Predicated region
  $region10: #{dnn_forward.1} parent=0 // pred_check
    _
  $region11: #{dnn_forward.1} parent=0 // pred_check_branch
    %17 = sbr.rel (0) target = $region13
  $region12: #{dnn_forward.1} parent=0 // pred_region
    _
  $region13: #{dnn_forward.1} parent=0 // pred_fallthru
    _
  // Predicated region
  $region14: #{dnn_forward.1} parent=0 // pred_check
    _
  $region15: #{dnn_forward.1} parent=0 // pred_check_branch
    %19 = sbr.rel (0) target = $region17
  $region16: #{dnn_forward.1} parent=0 // pred_region
    _
  $region17: #{dnn_forward.1} parent=0 // pred_fallthru
    _
  // Predicated region
  $region18: #{dnn_forward.1} parent=0 // pred_check
    _
  $region19: #{dnn_forward.1} parent=0 // pred_check_branch
    %21 = sbr.rel (0) target = $region21
  $region20: #{dnn_forward.1} parent=0 // pred_region
    _
  $region21: #{dnn_forward.1} parent=0 // pred_fallthru
    _
  // Predicated region
  $region22: #{dnn_forward.1} parent=0 // pred_check
    _
  $region23: #{dnn_forward.1} parent=0 // pred_check_branch
    %23 = sbr.rel (0) target = $region25
  $region24: #{dnn_forward.1} parent=0 // pred_region
    _
  $region25: #{dnn_forward.1} parent=0 // pred_fallthru
    _
  // Predicated region
  $region26: #{dnn_forward.1} parent=0 // pred_check
    _
  $region27: #{dnn_forward.1} parent=0 // pred_check_branch
    %25 = sbr.rel (0) target = $region29
  $region28: #{dnn_forward.1} parent=0 // pred_region
    _
  $region29: #{dnn_forward.1} parent=0 // pred_fallthru
    _
  %v26 = vld [vmem:[%s0] sm:$0xff]
  %v27 = vld [vmem:[%s1] sm:$0xff]
  %v28 = vld [vmem:[%s1 + $0x8] sm:$0xff]
  %v29 = vld [vmem:[%s1 + $0x10] sm:$0xff]
  %v30 = vld [vmem:[%s1 + $0x18] sm:$0xff]
  %v31 = vld [vmem:[%s1 + $0x20] sm:$0xff]
  %v32 = vld [vmem:[%s1 + $0x28] sm:$0xff]
  %v33 = vld [vmem:[%s1 + $0x30] sm:$0xff]
  %v34 = vld [vmem:[%s1 + $0x38] sm:$0xff]
  %v35 = vld [vmem:[%s1 + $0x40] sm:$0xff]
  %v36 = vld [vmem:[%s1 + $0x48] sm:$0xff]
  %v37 = vld [vmem:[%s1 + $0x50] sm:$0xff]
  %v38 = vld [vmem:[%s1 + $0x58] sm:$0xff]
  %v39 = vld [vmem:[%s1 + $0x60] sm:$0xff]
  %v40 = vld [vmem:[%s1 + $0x68] sm:$0xff]
  %v41 = vld [vmem:[%s1 + $0x70] sm:$0xff]
  %v42 = vld [vmem:[%s1 + $0x78] sm:$0xff]
  %v43 = vld [vmem:[%s2] sm:$0x1]
  %v45 = vperm.slane %v43, 0
  %47 = vmatpush.msra.mxu0 %v42
  %48 = vmatpush.msra.mxu0 %v41
  %49 = vmatpush.msra.mxu0 %v40
  %50 = vmatpush.msra.mxu0 %v39
  %51 = vmatpush.msra.mxu0 %v38
  %52 = vmatpush.msra.mxu0 %v37
  %53 = vmatpush.msra.mxu0 %v36
  %54 = vmatpush.msra.mxu0 %v35
  %55 = vmatpush.msra.mxu0 %v34
  %56 = vmatpush.msra.mxu0 %v33
  %57 = vmatpush.msra.mxu0 %v32
  %58 = vmatpush.msra.mxu0 %v31
  %59 = vmatpush.msra.mxu0 %v30
  %60 = vmatpush.msra.mxu0 %v29
  %61 = vmatpush.msra.mxu0 %v28
  %62 = vmatpush.msra.mxu0 %v27
  %63 = vmatmul.f32.gmra.mxu0 %v26
  %v64 = vpop.f32.mrf.mxu0
  %v65 = vadd.f32 %v45, %v64
  %66 = vdwg.mxu0
  %v67 = vmax.f32 %v65, 0.0
  %v68 = vld [vmem:[%s3] sm:$0xff]
  %v69 = vld [vmem:[%s3 + $0x8] sm:$0xff]
  %v70 = vld [vmem:[%s3 + $0x10] sm:$0xff]
  %v71 = vld [vmem:[%s3 + $0x18] sm:$0xff]
  %v72 = vld [vmem:[%s3 + $0x20] sm:$0xff]
  %v73 = vld [vmem:[%s3 + $0x28] sm:$0xff]
  %v74 = vld [vmem:[%s3 + $0x30] sm:$0xff]
  %v75 = vld [vmem:[%s3 + $0x38] sm:$0xff]
  %v76 = vld [vmem:[%s3 + $0x40] sm:$0xff]
  %v77 = vld [vmem:[%s3 + $0x48] sm:$0xff]
  %v78 = vld [vmem:[%s3 + $0x50] sm:$0xff]
  %v79 = vld [vmem:[%s3 + $0x58] sm:$0xff]
  %v80 = vld [vmem:[%s3 + $0x60] sm:$0xff]
  %v81 = vld [vmem:[%s3 + $0x68] sm:$0xff]
  %v82 = vld [vmem:[%s3 + $0x70] sm:$0xff]
  %v83 = vld [vmem:[%s3 + $0x78] sm:$0xff]
  %v84 = vld [vmem:[%s4] sm:$0x1]
  %v86 = vperm.slane %v84, 0
  %88 = vmatpush.msra.mxu0 %v83
  %89 = vmatpush.msra.mxu0 %v82
  %90 = vmatpush.msra.mxu0 %v81
  %91 = vmatpush.msra.mxu0 %v80
  %92 = vmatpush.msra.mxu0 %v79
  %93 = vmatpush.msra.mxu0 %v78
  %94 = vmatpush.msra.mxu0 %v77
  %95 = vmatpush.msra.mxu0 %v76
  %96 = vmatpush.msra.mxu0 %v75
  %97 = vmatpush.msra.mxu0 %v74
  %98 = vmatpush.msra.mxu0 %v73
  %99 = vmatpush.msra.mxu0 %v72
  %100 = vmatpush.msra.mxu0 %v71
  %101 = vmatpush.msra.mxu0 %v70
  %102 = vmatpush.msra.mxu0 %v69
  %103 = vmatpush.msra.mxu0 %v68
  %104 = vmatmul.f32.gmra.mxu0 %v67
  %v105 = vpop.f32.mrf.mxu0
  %v106 = vadd.f32 %v86, %v105
  %107 = vdwg.mxu0
  %v108 = vmax.f32 %v106, 0.0
  %v109 = vld [vmem:[%s5] sm:$0xff]
  %v110 = vld [vmem:[%s5 + $0x8] sm:$0xff]
  %v111 = vld [vmem:[%s5 + $0x10] sm:$0xff]
  %v112 = vld [vmem:[%s5 + $0x18] sm:$0xff]
  %v113 = vld [vmem:[%s5 + $0x20] sm:$0xff]
  %v114 = vld [vmem:[%s5 + $0x28] sm:$0xff]
  %v115 = vld [vmem:[%s5 + $0x30] sm:$0xff]
  %v116 = vld [vmem:[%s5 + $0x38] sm:$0xff]
  %v117 = vld [vmem:[%s5 + $0x40] sm:$0xff]
  %v118 = vld [vmem:[%s5 + $0x48] sm:$0xff]
  %v119 = vld [vmem:[%s5 + $0x50] sm:$0xff]
  %v120 = vld [vmem:[%s5 + $0x58] sm:$0xff]
  %v121 = vld [vmem:[%s5 + $0x60] sm:$0xff]
  %v122 = vld [vmem:[%s5 + $0x68] sm:$0xff]
  %v123 = vld [vmem:[%s5 + $0x70] sm:$0xff]
  %v124 = vld [vmem:[%s5 + $0x78] sm:$0xff]
  %v125 = vld [vmem:[%s6] sm:$0x1]
  %v127 = vperm.slane %v125, 0
  %129 = vmatpush.msra.mxu0 %v124
  %130 = vmatpush.msra.mxu0 %v123
  %131 = vmatpush.msra.mxu0 %v122
  %132 = vmatpush.msra.mxu0 %v121
  %133 = vmatpush.msra.mxu0 %v120
  %134 = vmatpush.msra.mxu0 %v119
  %135 = vmatpush.msra.mxu0 %v118
  %136 = vmatpush.msra.mxu0 %v117
  %137 = vmatpush.msra.mxu0 %v116
  %138 = vmatpush.msra.mxu0 %v115
  %139 = vmatpush.msra.mxu0 %v114
  %140 = vmatpush.msra.mxu0 %v113
  %141 = vmatpush.msra.mxu0 %v112
  %142 = vmatpush.msra.mxu0 %v111
  %143 = vmatpush.msra.mxu0 %v110
  %144 = vmatpush.msra.mxu0 %v109
  %145 = vmatmul.f32.gmra.mxu0 %v108
  %v146 = vpop.f32.mrf.mxu0
  %v147 = vadd.f32 %v127, %v146
  %148 = vdwg.mxu0
  %v149 = vmax.f32 %v147, 0.0
  %150 = vst [vmem:[%s7] sm:$0xff] %v149
  // Predicated region
  $region30: #{dnn_forward.1} parent=0 // pred_check
    _
  $region31: #{dnn_forward.1} parent=0 // pred_check_branch
    %152 = sbr.rel (0) target = $region33
  $region32: #{dnn_forward.1} parent=0 // pred_region
    _
  $region33: #{dnn_forward.1} parent=0 // pred_fallthru
    _
  // Predicated region
  $region34: #{dnn_forward.1} parent=0 // pred_check
    _
  $region35: #{dnn_forward.1} parent=0 // pred_check_branch
    %154 = sbr.rel (0) target = $region37
  $region36: #{dnn_forward.1} parent=0 // pred_region
    _
  $region37: #{dnn_forward.1} parent=0 // pred_fallthru
    _

</llo_original>
